<compile_context>
chip_gen: v7x
topology: tpu7x:2x2x1
jax: 0.10.0
libtpu: 0.0.40
codegen_flags: <defaults>
</compile_context>

<pallas_src>
import jax
import jax.numpy as jnp
from jax.experimental import pallas as pl
from jax.experimental.pallas import tpu as pltpu


def _round_up(n, m):
    return ((n + m - 1) // m) * m


# ------------------------------ kernels -------------------------------------

def _linear_kernel(x_ref, w_ref, b_ref, o_ref):
    # x:(tm, In)  w:(In, OutP)  b:(1, OutP)  o:(tm, OutP) — whole-K, no accumulator.
    o_ref[...] = (
        jnp.dot(x_ref[...], w_ref[...], preferred_element_type=jnp.float32)
        + b_ref[...]
    ).astype(o_ref.dtype)


def _linear_kernel_ktiled(x_ref, w_ref, b_ref, o_ref, acc_ref):
    # Grid = (M tiles, K tiles); K is a reduction axis ("arbitrary").
    k = pl.program_id(1)

    @pl.when(k == 0)
    def _():
        acc_ref[...] = jnp.zeros_like(acc_ref)

    acc_ref[...] += jnp.dot(x_ref[...], w_ref[...],
                            preferred_element_type=jnp.float32)

    @pl.when(k == pl.num_programs(1) - 1)
    def _():
        o_ref[...] = (acc_ref[...] + b_ref[...]).astype(o_ref.dtype)


# --------------------------- parameter prep ---------------------------------

def prepare_linear_params(weight, bias, *, expected_batch=None, lane_multiple=128):
    """One-time (init-time) layout prep, hoisted out of the forward path.

    weight: (Out, In) torch nn.Linear layout, bias: (Out,).
    Returns (w_t, bias2d) with w_t:(In, OutPad), bias2d:(1, OutPad).

    Out is padded to a lane multiple only when the output/activation stream
    can dominate; in the small-batch weight-bound regime padding 16 -> 128
    would inflate the dominant weight DMA 8x for no benefit.
    (If the layer ever becomes compute-bound on v6e/v7x, lane_multiple=256
    matches the 2x256x256 MXU column width.)
    """
    Out, In = weight.shape
    pad_out = (Out >= lane_multiple) or (
        expected_batch is not None and expected_batch >= 128
    )
    out_pad = _round_up(Out, lane_multiple) if pad_out else Out
    w_t = weight.T  # (In, Out): contract on x's last dim, Out lands on lanes.
    b = bias
    if out_pad != Out:
        w_t = jnp.pad(w_t, ((0, 0), (0, out_pad - Out)))
        b = jnp.pad(b, (0, out_pad - Out))
    # TODO(synk): optionally store w_t in bf16 (halves the weight HBM stream;
    # keep the bias add / output in f32 — v5e's VPU has no bf16).
    return w_t, b.reshape(1, out_pad)


# ------------------------------ forward -------------------------------------

_VMEM_TILE_BUDGET = 24 * 1024 * 1024   # conservative: fits v7x 32 MiB scoped default
_VMEM_LIMIT_BYTES = 48 * 1024 * 1024   # raise scoped limit (v5e default is 16 MiB)


def _whole_k_vmem_bytes(tm, k, out_pad):
    # double-buffered x + double-buffered out + weight (counted 2x, conservative) + bias
    return 4 * (2 * tm * k + 2 * tm * out_pad + 2 * k * out_pad + 2 * out_pad)


def linear_regression_forward(x, w_t, bias2d, *, out_features=None,
                              tm_max=512, tk_max=512):
    """x: (B, In) f32, w_t: (In, OutPad), bias2d: (1, OutPad) -> (B, Out)."""
    B, In = x.shape
    in_w, out_pad = w_t.shape
    assert In == in_w, "x feature dim must match weight input dim"
    if out_features is None:
        out_features = out_pad
    dtype = x.dtype

    # Batch padding: only to a sublane multiple of 8 (never up to tm_max).
    b_pad = _round_up(B, 8)
    if b_pad != B:
        x = jnp.pad(x, ((0, b_pad - B), (0, 0)))

    # VMEM-aware tm for the whole-K design.
    tm = min(tm_max, b_pad)
    while tm > 8 and _whole_k_vmem_bytes(tm, In, out_pad) > _VMEM_TILE_BUDGET:
        tm = max(8, tm // 2)
    whole_k_fits = _whole_k_vmem_bytes(tm, In, out_pad) <= _VMEM_TILE_BUDGET

    if whole_k_fits and b_pad <= tm:
        # Single block: no grid, no pipeline bookkeeping.
        out = pl.pallas_call(
            _linear_kernel,
            out_shape=jax.ShapeDtypeStruct((b_pad, out_pad), dtype),
            in_specs=[
                pl.BlockSpec((b_pad, In), lambda: (0, 0)),
                pl.BlockSpec((In, out_pad), lambda: (0, 0)),
                pl.BlockSpec((1, out_pad), lambda: (0, 0)),
            ],
            out_specs=pl.BlockSpec((b_pad, out_pad), lambda: (0, 0)),
            compiler_params=pltpu.CompilerParams(
                vmem_limit_bytes=_VMEM_LIMIT_BYTES),
        )(x, w_t, bias2d)
    elif whole_k_fits:
        # Batch-tiled path: weight/bias stay resident (constant index_map),
        # batch axis "parallel" (shards across both TCs on v7x).
        # Pick tm from {tm, tm/2, tm/4} minimising last-tile waste.
        candidates = [c for c in (tm, tm // 2, tm // 4) if c >= 64] or [tm]
        tm = min(candidates, key=lambda c: (_round_up(b_pad, c) - b_pad, -c))
        m_pad = _round_up(b_pad, tm)
        if m_pad != b_pad:
            x = jnp.pad(x, ((0, m_pad - b_pad), (0, 0)))
        out = pl.pallas_call(
            _linear_kernel,
            out_shape=jax.ShapeDtypeStruct((m_pad, out_pad), dtype),
            grid=(m_pad // tm,),
            in_specs=[
                pl.BlockSpec((tm, In), lambda i: (i, 0)),
                pl.BlockSpec((In, out_pad), lambda i: (0, 0)),
                pl.BlockSpec((1, out_pad), lambda i: (0, 0)),
            ],
            out_specs=pl.BlockSpec((tm, out_pad), lambda i: (i, 0)),
            compiler_params=pltpu.CompilerParams(
                dimension_semantics=("parallel",),
                vmem_limit_bytes=_VMEM_LIMIT_BYTES,
            ),
        )(x, w_t, bias2d)
        b_pad = m_pad
    else:
        # K-tiled fallback for large In (whole-K weight tile won't fit VMEM).
        # TODO(synk): add N (Out) tiling as well if out_pad alone blows the
        # VMEM budget.
        def ktile_bytes(tm_, tk_):
            return 4 * (2 * tm_ * tk_ + 2 * tm_ * out_pad
                        + 2 * tk_ * out_pad + tm_ * out_pad + 2 * out_pad)

        tk = min(tk_max, _round_up(In, 128))
        tm = min(tm_max, b_pad)
        while tm > 8 and ktile_bytes(tm, tk) > _VMEM_TILE_BUDGET:
            tm = max(8, tm // 2)
        while tk > 128 and ktile_bytes(tm, tk) > _VMEM_TILE_BUDGET:
            tk = max(128, tk // 2)

        k_pad = _round_up(In, tk)
        m_pad = _round_up(b_pad, tm)
        x_p = jnp.pad(x, ((0, m_pad - b_pad), (0, k_pad - In)))
        w_p = jnp.pad(w_t, ((0, k_pad - In), (0, 0)))
        out = pl.pallas_call(
            _linear_kernel_ktiled,
            out_shape=jax.ShapeDtypeStruct((m_pad, out_pad), dtype),
            grid=(m_pad // tm, k_pad // tk),
            in_specs=[
                pl.BlockSpec((tm, tk), lambda i, k: (i, k)),
                pl.BlockSpec((tk, out_pad), lambda i, k: (k, 0)),
                pl.BlockSpec((1, out_pad), lambda i, k: (0, 0)),
            ],
            out_specs=pl.BlockSpec((tm, out_pad), lambda i, k: (i, 0)),
            scratch_shapes=[pltpu.VMEM((tm, out_pad), jnp.float32)],
            compiler_params=pltpu.CompilerParams(
                dimension_semantics=("parallel", "arbitrary"),
                vmem_limit_bytes=_VMEM_LIMIT_BYTES,
            ),
        )(x_p, w_p, bias2d)
        b_pad = m_pad

    # Slice only if padding was actually applied (avoids an extra copy kernel
    # in the common unpadded case).
    if b_pad != B or out_pad != out_features:
        out = out[:B, :out_features]
    return out


if __name__ == "__main__":
    # Module config: linearRegression(inputSize=32, outputSize=16)
    inputSize, outputSize = 32, 16
    batch = 8

    key = jax.random.PRNGKey(0)
    kx, kw, kb = jax.random.split(key, 3)

    x = jax.random.normal(kx, (batch, inputSize), dtype=jnp.float32)
    bound = 1.0 / jnp.sqrt(inputSize)
    weight = jax.random.uniform(
        kw, (outputSize, inputSize), minval=-bound, maxval=bound, dtype=jnp.float32
    )
    bias = jax.random.uniform(
        kb, (outputSize,), minval=-bound, maxval=bound, dtype=jnp.float32
    )

    # One-time parameter prep (hoisted out of the forward path); the jitted
    # forward closes over the prepared arrays so they are baked in as
    # constants and not re-laid-out per call.
    w_t, bias2d = prepare_linear_params(weight, bias, expected_batch=batch)
    fwd = jax.jit(
        lambda xx: linear_regression_forward(
            xx, w_t, bias2d, out_features=outputSize
        )
    )

    out = fwd(x)
    jax.block_until_ready(out)

    # Reference check against plain JAX.
    ref = x @ weight.T + bias
    assert out.shape == (batch, outputSize)
    assert jnp.allclose(out, ref, atol=1e-5, rtol=1e-5)

    print("KERNEL_OK")
</pallas_src>

<mosaic_0001>
module attributes {stable_mosaic.version = 11 : i64} {
  func.func @_linear_kernel(%arg0: memref<8x32xf32, #tpu.memory_space<vmem>>, %arg1: memref<32x16xf32, #tpu.memory_space<vmem>>, %arg2: memref<1x16xf32, #tpu.memory_space<vmem>>, %arg3: memref<8x16xf32, #tpu.memory_space<vmem>>) attributes {dimension_semantics = [], scalar_prefetch = 0 : i64, scratch_operands = 0 : i64, tpu.core_type = #tpu.core_type<tc>} {
    %c0 = arith.constant 0 : index
    %c0_0 = arith.constant 0 : index
    %0 = vector.load %arg0[%c0, %c0_0] : memref<8x32xf32, #tpu.memory_space<vmem>>, vector<8x32xf32>
    %c0_1 = arith.constant 0 : index
    %c0_2 = arith.constant 0 : index
    %1 = vector.load %arg1[%c0_1, %c0_2] : memref<32x16xf32, #tpu.memory_space<vmem>>, vector<32x16xf32>
    %cst = arith.constant dense<0.000000e+00> : vector<8x16xf32>
    %2 = tpu.matmul %0, %1, %cst {dimension_numbers = #tpu.dot_dimension_numbers<[1], [0], [0], [1], [0, 0, 1, 1], [], []>} : vector<8x32xf32>, vector<32x16xf32>, vector<8x16xf32> -> vector<8x16xf32>
    %c0_3 = arith.constant 0 : index
    %c0_4 = arith.constant 0 : index
    %3 = vector.load %arg2[%c0_3, %c0_4] : memref<1x16xf32, #tpu.memory_space<vmem>>, vector<1x16xf32>
    %4 = vector.broadcast %3 : vector<1x16xf32> to vector<8x16xf32>
    %5 = arith.addf %2, %4 : vector<8x16xf32>
    %c0_5 = arith.constant 0 : index
    %c0_6 = arith.constant 0 : index
    %6 = vector.load %arg3[%c0_5, %c0_6] : memref<8x16xf32, #tpu.memory_space<vmem>>, vector<8x16xf32>
    tpu.vector_store %arg3[%c0_5, %c0_6], %5 {strides = array<i32>} : memref<8x16xf32, #tpu.memory_space<vmem>>, vector<8x16xf32>,
    return
  }
}

</mosaic_0001>

<llo_original>
// kernel: _lambda_.1
$region0: #{_lambda_.1}
  #allocation0 [shape = 'u32[]', space=smem, size = 0x4, offset = 0x4, fixed_abs, tag = 'smem constant byte address 0x4 - core index']
  #allocation1 [shape = 'u32[144,128]{1,0:T(1,128)}', space=vmem, size = 0x12000, scoped, tag = 'internal scratch']
  %s0 = inlined_call_operand.hbm [shape: f32[8,32], index: 0, kind: input, shape index: {}]
  %s1 = inlined_call_operand.hbm [shape: f32[32,16], index: 1, kind: input, shape index: {}]
  %s2 = inlined_call_operand.vmem [shape: f32[1,16], index: 2, kind: input, shape index: {}]
  %s3 = inlined_call_operand.hbm [shape: f32[8,16], index: 3, kind: output, shape index: {}]
  %s4 = sld [smem:[#allocation0]]
  $region30: #{_lambda_.1} parent=0
    _
  %s6 = ssub.s32 1, %s4
  %s7 = scalar_select 0, %s6, %s4
  $region1: #{_lambda_.1} parent=0
    #allocation2 [shape = 'u8[4096]{0}', space=vmem, size = 0x1000, scoped, tag = 'input window, operand 0, single buffered']
    #allocation3 [shape = 's32[1]{0}', space=sflag, size = 0x4, scoped, tag = 'scoped memory for _lambda_.1']
    #allocation4 [shape = 's32[1]{0}', space=sflag, size = 0x4, scoped, tag = 'scoped memory for _lambda_.1']
    #allocation5 [shape = 'u8[16384]{0}', space=vmem, size = 0x4000, scoped, tag = 'input window, operand 1, single buffered']
    #allocation6 [shape = 's32[1]{0}', space=sflag, size = 0x4, scoped, tag = 'scoped memory for _lambda_.1']
    #allocation7 [shape = 'u8[4096]{0}', space=vmem, size = 0x1000, scoped, tag = 'output window, operand 0, single buffered']
    %8 = vsyncpa [#allocation3], 0
    %9 = vsyncpa [#allocation6], 0
    %10 = vsyncpa [#allocation4], 0
    // Predicated region
    $region2: #{_lambda_.1} parent=1 // pred_check
      _
    $region3: #{_lambda_.1} parent=1 // pred_check_branch
      %12 = sbr.rel (0) target = $region5
    $region4: #{_lambda_.1} parent=1 // pred_region
      %s14 = ssub.s32 128, 128
      %15 = vsyncadd [#allocation3], %s14
      %s17 = sshll.u32 [#allocation2], 4
      %s18 = int_to_ptr.vmem [resolvable:$true] %s17
      %20 = dma.hbm_to_vmem [thread:$0]  %s0, 128, %s18, [#allocation3]
    $region5: #{_lambda_.1} parent=1 // pred_fallthru
      _
    // Predicated region
    $region6: #{_lambda_.1} parent=1 // pred_check
      _
    $region7: #{_lambda_.1} parent=1 // pred_check_branch
      %22 = sbr.rel (0) target = $region9
    $region8: #{_lambda_.1} parent=1 // pred_region
      %s24 = ssub.s32 512, 512
      %25 = vsyncadd [#allocation6], %s24
      %s26 = sshll.u32 [#allocation5], 4
      %s27 = int_to_ptr.vmem [resolvable:$true] %s26
      %32 = dma.hbm_to_vmem [thread:$0]  %s1, 512, %s27, [#allocation6], 128, 128, 8
    $region9: #{_lambda_.1} parent=1 // pred_fallthru
      _
    // Predicated region
    $region10: #{_lambda_.1} parent=1 // pred_check
      _
    $region11: #{_lambda_.1} parent=1 // pred_check_branch
      %34 = sbr.rel (0) target = $region13
    $region12: #{_lambda_.1} parent=1 // pred_region
      _
    $region13: #{_lambda_.1} parent=1 // pred_fallthru
      _
    // Predicated region
    $region14: #{_lambda_.1} parent=1 // pred_check
      _
    $region15: #{_lambda_.1} parent=1 // pred_check_branch
      %36 = sbr.rel (0) target = $region17
    $region16: #{_lambda_.1} parent=1 // pred_region
      %37 = dma.done [#allocation3], 128
    $region17: #{_lambda_.1} parent=1 // pred_fallthru
      _
    // Predicated region
    $region18: #{_lambda_.1} parent=1 // pred_check
      _
    $region19: #{_lambda_.1} parent=1 // pred_check_branch
      %39 = sbr.rel (0) target = $region21
    $region20: #{_lambda_.1} parent=1 // pred_region
      %40 = dma.done [#allocation6], 512
    $region21: #{_lambda_.1} parent=1 // pred_fallthru
      _
    %v41 = vld [vmem:[#allocation2] sm:$0xff]
    %v42 = vld [vmem:[#allocation5] sm:$0xff]
    %v43 = vld [vmem:[#allocation5 + $0x8] sm:$0xff]
    %v44 = vld [vmem:[#allocation5 + $0x10] sm:$0xff]
    %v45 = vld [vmem:[#allocation5 + $0x18] sm:$0xff]
    %v46 = vld [vmem:[%s2] sm:$0x1]
    %v48 = vlaneseq
    %v49 = vshrl.u32 %v48, 7
    %v50 = vsub.s32 0, %v49
    %v51 = vrot.slane %v46, %v50
    %vm53 = vcmask 261120
    %v55 = vsel %vm53, %v41, 0
    %57 = vmatprep.subr.mxu0 0.0
    %58 = vmatpush1.msra.mxu0 %v42
    %59 = vmatprep.subr.mxu0 0.0
    %60 = vmatpush1.msra.mxu0 %v43
    %61 = vmatprep.subr.mxu0 0.0
    %62 = vmatpush1.msra.mxu0 %v44
    %63 = vmatprep.subr.mxu0 0.0
    %64 = vmatpush1.msra.mxu0 %v45
    %65 = vmatprep.subr.mxu0 0.0
    %66 = vmatpush1.msra.mxu0 0.0
    %67 = vmatprep.subr.mxu0 0.0
    %68 = vmatpush1.msra.mxu0 0.0
    %69 = vmatprep.subr.mxu0 0.0
    %70 = vmatpush1.msra.mxu0 0.0
    %71 = vmatprep.subr.mxu0 0.0
    %72 = vmatpush1.msra.mxu0 0.0
    %73 = vmatprep.subr.mxu0 0.0
    %74 = vmatpush1.msra.mxu0 0.0
    %75 = vmatprep.subr.mxu0 0.0
    %76 = vmatpush1.msra.mxu0 0.0
    %77 = vmatprep.subr.mxu0 0.0
    %78 = vmatpush1.msra.mxu0 0.0
    %79 = vmatprep.subr.mxu0 0.0
    %80 = vmatpush1.msra.mxu0 0.0
    %81 = vmatprep.subr.mxu0 0.0
    %82 = vmatpush1.msra.mxu0 0.0
    %83 = vmatprep.subr.mxu0 0.0
    %84 = vmatpush1.msra.mxu0 0.0
    %85 = vmatprep.subr.mxu0 0.0
    %86 = vmatpush1.msra.mxu0 0.0
    %87 = vmatprep.subr.mxu0 0.0
    %88 = vmatpush1.msra.mxu0 0.0
    %89 = vmatprep.subr.mxu0 0.0
    %90 = vmatpush1.msra.mxu0 0.0
    %91 = vmatprep.subr.mxu0 0.0
    %92 = vmatpush1.msra.mxu0 0.0
    %93 = vmatprep.subr.mxu0 0.0
    %94 = vmatpush1.msra.mxu0 0.0
    %95 = vmatprep.subr.mxu0 0.0
    %96 = vmatpush1.msra.mxu0 0.0
    %97 = vmatprep.subr.mxu0 0.0
    %98 = vmatpush1.msra.mxu0 0.0
    %99 = vmatprep.subr.mxu0 0.0
    %100 = vmatpush1.msra.mxu0 0.0
    %101 = vmatprep.subr.mxu0 0.0
    %102 = vmatpush1.msra.mxu0 0.0
    %103 = vmatprep.subr.mxu0 0.0
    %104 = vmatpush1.msra.mxu0 0.0
    %105 = vmatprep.subr.mxu0 0.0
    %106 = vmatpush1.msra.mxu0 0.0
    %107 = vmatprep.subr.mxu0 0.0
    %108 = vmatpush1.msra.mxu0 0.0
    %109 = vmatprep.subr.mxu0 0.0
    %110 = vmatpush1.msra.mxu0 0.0
    %111 = vmatprep.subr.mxu0 0.0
    %112 = vmatpush1.msra.mxu0 0.0
    %113 = vmatprep.subr.mxu0 0.0
    %114 = vmatpush1.msra.mxu0 0.0
    %115 = vmatprep.subr.mxu0 0.0
    %116 = vmatpush1.msra.mxu0 0.0
    %117 = vmatprep.subr.mxu0 0.0
    %118 = vmatpush1.msra.mxu0 0.0
    %119 = vmatprep.subr.mxu0 0.0
    %120 = vmatpush1.msra.mxu0 0.0
    %121 = vmatprep.mubr.f32.mxu0 0.0
    %122 = vmatmul.mubr.f32.gmra.mrb[0].mxu0 %v55
    %v123 = vpop.f32.mrb[0].mxu0
    %v124 = vadd.f32 %v51, %v123
    %v125 = vpop.f32.mrb[0].mxu0
    %126 = vdwg.mxu0
    %vm127 = vcmask 130048
    %128 = vst.msk [vmem:[#allocation7] sm:$0xff] %vm127, %v124
    // Predicated region
    $region22: #{_lambda_.1} parent=1 // pred_check
      _
    $region23: #{_lambda_.1} parent=1 // pred_check_branch
      %130 = sbr.rel (0) target = $region25
    $region24: #{_lambda_.1} parent=1 // pred_region
      %s132 = ssub.s32 128, 128
      %133 = vsyncadd [#allocation4], %s132
      %s135 = sshll.u32 [#allocation7], 4
      %s136 = int_to_ptr.vmem [resolvable:$true] %s135
      %138 = dma.vmem_to_hbm [thread:$0]  %s136, 128, %s3, [#allocation4]
    $region25: #{_lambda_.1} parent=1 // pred_fallthru
      _
    // Predicated region
    $region26: #{_lambda_.1} parent=1 // pred_check
      _
    $region27: #{_lambda_.1} parent=1 // pred_check_branch
      %140 = sbr.rel (0) target = $region29
    $region28: #{_lambda_.1} parent=1 // pred_region
      %141 = dma.done [#allocation4], 128
    $region29: #{_lambda_.1} parent=1 // pred_fallthru
      _
    %142 = vsyncpa [#allocation3], 1
    %143 = vsyncpa [#allocation6], 1
    %144 = vsyncpa [#allocation4], 1

</llo_original>
